<compile_context>
chip_gen: v7x
topology: tpu7x:2x2x1
jax: 0.10.0
libtpu: 0.0.40
codegen_flags: <defaults>
</compile_context>

<pallas_src>
import functools
import math

import jax
import jax.numpy as jnp
from jax.experimental import pallas as pl
from jax.experimental.pallas import tpu as pltpu

_F32_TILE_TEMPS = 4  # f32 full-tile temporaries the body can materialize


def _round_up(x: int, m: int) -> int:
    return ((x + m - 1) // m) * m


def _tpu_vmem_bytes() -> int:
    try:
        return int(pltpu.get_tpu_info().vmem_capacity_bytes)
    except Exception:
        return 64 * 1024 * 1024  # conservative fallback (v7x per-TC size)


def _num_tensorcores() -> int:
    """Best-effort TensorCore-per-chip count; default 1 (v5e/v6e-safe)."""
    n = 1
    try:
        info = pltpu.get_tpu_info()
        for name in ("num_cores", "core_count", "tensorcore_count",
                     "num_tensorcores", "cores_per_chip"):
            v = getattr(info, name, None)
            if isinstance(v, int) and v > 0:
                n = max(n, v)
    except Exception:
        pass
    try:
        v = getattr(jax.devices()[0], "num_cores", None)
        if isinstance(v, int) and v > 0:
            n = max(n, v)
    except Exception:
        pass
    return n


def _pick_tile_rows(n_rows, width, itemsize, vmem_cap, fixed_bytes, num_tc):
    """Rows per block: byte-budgeted from VMEM, sublane aligned, TC-aware."""
    sublane = max(8, 32 // max(itemsize, 1))  # 8 f32 / 16 bf16 / 32 int8
    if n_rows <= sublane:
        return n_rows  # single full block ("equal to array dim" exemption)
    # ~half of physical VMEM for the pipeline: in+out tiles double-buffered in
    # the I/O dtype plus the f32 full-tile temporaries inside the body.
    budget = vmem_cap // 2 - fixed_bytes
    per_row = width * (4 * itemsize + _F32_TILE_TEMPS * 4)
    tr = max(budget // per_row, sublane)
    tr = max((tr // sublane) * sublane, sublane)
    # Multi-TC chips (v7x): keep >=4 grid steps so each core double-buffers and
    # the load is balanced.  Single-TC chips (v5e/v6e): biggest tile that fits.
    if num_tc >= 2 and n_rows >= 4 * sublane:
        quarter = _round_up(-(-n_rows // 4), sublane)
        tr = min(tr, quarter)
    if tr >= n_rows:
        return n_rows
    return tr


def _vmem_limit(tr, width, itemsize, fixed_bytes, vmem_cap):
    tile_io = tr * width * itemsize
    needed = 4 * tile_io + _F32_TILE_TEMPS * tr * width * 4 + fixed_bytes
    needed += 2 << 20  # headroom for compiler scratch
    return int(min(max(needed, 32 << 20), int(vmem_cap * 0.9)))


def _layernorm_rowwise_kernel(x_ref, g_ref, b_ref, o_ref, *, eps):
    # x_ref: (TR, H) block; g_ref / b_ref: (1, H), resident across steps.
    x = x_ref[...].astype(jnp.float32)
    g = g_ref[...].astype(jnp.float32)
    b = b_ref[...].astype(jnp.float32)
    mean = jnp.mean(x, axis=-1, keepdims=True)
    mean_sq = jnp.mean(x * x, axis=-1, keepdims=True)
    # Single-pass biased variance; clamp guards the E[x^2]-E[x]^2 cancellation.
    var = jnp.maximum(mean_sq - mean * mean, 0.0)
    scale = jax.lax.rsqrt(var + eps) * g
    shift = b - mean * scale
    o_ref[...] = (x * scale + shift).astype(o_ref.dtype)


def _layernorm_packed_kernel(x_ref, g_ref, b_ref, ones_ref, o_ref, *, eps, inv_h):
    # x_ref: (TR, W) block with W = k*H a multiple of 128 (k rows per lane-row).
    # ones_ref: (W, W) block-diagonal ones; x @ ones computes each group's sum
    # and broadcasts it back across that group's lanes (MXU is idle otherwise).
    x = x_ref[...].astype(jnp.float32)
    g = g_ref[...].astype(jnp.float32)
    b = b_ref[...].astype(jnp.float32)
    ones_bd = ones_ref[...]
    mean = jnp.dot(x, ones_bd, preferred_element_type=jnp.float32) * inv_h
    mean_sq = jnp.dot(x * x, ones_bd, preferred_element_type=jnp.float32) * inv_h
    var = jnp.maximum(mean_sq - mean * mean, 0.0)
    scale = jax.lax.rsqrt(var + eps) * g
    shift = b - mean * scale
    o_ref[...] = (x * scale + shift).astype(o_ref.dtype)


def layer_normalization(x, gamma, beta, eps=1e-5):
    """LayerNorm over the trailing dims given by gamma.shape (parameters_shape)."""
    param_shape = gamma.shape
    h = math.prod(param_shape) if param_shape else 1
    lead = x.shape[: x.ndim - len(param_shape)]
    n_rows = math.prod(lead) if lead else 1

    itemsize = jnp.dtype(x.dtype).itemsize
    vmem_cap = _tpu_vmem_bytes()
    num_tc = _num_tensorcores()

    # Lane-dense repack when H is not a multiple of 128 and the packed width
    # stays small: fold k rows into the lane axis (zero-copy row-major reshape).
    k = math.lcm(h, 128) // h if (h > 0 and h % 128 != 0) else 1
    use_packed = (k > 1) and (k * h <= 1024) and (n_rows % k == 0) and (n_rows >= k)

    if use_packed:
        w = k * h
        rows2 = n_rows // k
        x2d = x.reshape(rows2, w)
        g2d = jnp.tile(gamma.reshape(1, h), (1, k))
        b2d = jnp.tile(beta.reshape(1, h), (1, k))
        ones_bd = jnp.kron(jnp.eye(k, dtype=jnp.float32),
                           jnp.ones((h, h), dtype=jnp.float32))
        fixed = 2 * w * w * 4 + 4 * w * jnp.dtype(gamma.dtype).itemsize
        tr = _pick_tile_rows(rows2, w, itemsize, vmem_cap, fixed, num_tc)
        grid = (pl.cdiv(rows2, tr),)  # ragged last block: OOB writes are masked
        kernel = functools.partial(_layernorm_packed_kernel,
                                   eps=float(eps), inv_h=1.0 / h)
        out2d = pl.pallas_call(
            kernel,
            out_shape=jax.ShapeDtypeStruct((rows2, w), x.dtype),
            grid_spec=pltpu.PrefetchScalarGridSpec(
                num_scalar_prefetch=0,
                grid=grid,
                in_specs=[
                    pl.BlockSpec((tr, w), lambda i: (i, 0)),
                    pl.BlockSpec((1, w), lambda i: (0, 0)),   # gamma: resident
                    pl.BlockSpec((1, w), lambda i: (0, 0)),   # beta: resident
                    pl.BlockSpec((w, w), lambda i: (0, 0)),   # ones: resident
                ],
                out_specs=pl.BlockSpec((tr, w), lambda i: (i, 0)),
            ),
            compiler_params=pltpu.CompilerParams(
                dimension_semantics=("parallel",),
                vmem_limit_bytes=_vmem_limit(tr, w, itemsize, fixed, vmem_cap),
            ),
        )(x2d, g2d, b2d, ones_bd)
        return out2d.reshape(x.shape)

    # Row-wise path: full-H block (lane-dense whenever H % 128 == 0).
    x2d = x.reshape(n_rows, h)
    g2d = gamma.reshape(1, h)
    b2d = beta.reshape(1, h)
    fixed = 4 * h * jnp.dtype(gamma.dtype).itemsize
    tr = _pick_tile_rows(n_rows, h, itemsize, vmem_cap, fixed, num_tc)
    grid = (pl.cdiv(n_rows, tr),)  # ragged last block: OOB writes are masked
    kernel = functools.partial(_layernorm_rowwise_kernel, eps=float(eps))
    out2d = pl.pallas_call(
        kernel,
        out_shape=jax.ShapeDtypeStruct((n_rows, h), x.dtype),
        grid_spec=pltpu.PrefetchScalarGridSpec(
            num_scalar_prefetch=0,
            grid=grid,
            in_specs=[
                pl.BlockSpec((tr, h), lambda i: (i, 0)),
                pl.BlockSpec((1, h), lambda i: (0, 0)),
                pl.BlockSpec((1, h), lambda i: (0, 0)),
            ],
            out_specs=pl.BlockSpec((tr, h), lambda i: (i, 0)),
        ),
        compiler_params=pltpu.CompilerParams(
            dimension_semantics=("parallel",),
            vmem_limit_bytes=_vmem_limit(tr, h, itemsize, fixed, vmem_cap),
        ),
    )(x2d, g2d, b2d)
    return out2d.reshape(x.shape)


def layer_normalization_ref(x, gamma, beta, eps=1e-5):
    """Pure-JAX reference matching the PyTorch module."""
    ndims = gamma.ndim
    dims = tuple(range(-ndims, 0))
    mean = jnp.mean(x, axis=dims, keepdims=True)
    var = jnp.mean((x - mean) ** 2, axis=dims, keepdims=True)
    std = jnp.sqrt(var + eps)
    y = (x - mean) / std
    return gamma * y + beta


if __name__ == "__main__":
    key = jax.random.PRNGKey(0)

    # Primary test: shapes implied by the module's forward (packed lane-dense path).
    batch, seq, hidden = 2, 8, 32
    parameters_shape = (hidden,)
    x = jax.random.normal(key, (batch, seq, hidden), dtype=jnp.float32)
    gamma = jnp.ones(parameters_shape, dtype=jnp.float32)   # nn.Parameter(torch.ones)
    beta = jnp.zeros(parameters_shape, dtype=jnp.float32)   # nn.Parameter(torch.zeros)
    out = jax.block_until_ready(layer_normalization(x, gamma, beta, eps=1e-5))
    ref = layer_normalization_ref(x, gamma, beta, eps=1e-5)
    assert out.shape == x.shape
    assert jnp.allclose(out, ref, atol=1e-4, rtol=1e-4), "mismatch vs reference (f32)"

    # Row count not a multiple of the packing factor -> row-wise fallback path,
    # plus non-trivial gamma/beta.
    k1, k2, k3 = jax.random.split(jax.random.PRNGKey(1), 3)
    x2 = jax.random.normal(k1, (3, 5, 48), dtype=jnp.float32)
    g2 = jax.random.normal(k2, (48,), dtype=jnp.float32)
    b2 = jax.random.normal(k3, (48,), dtype=jnp.float32)
    out2 = jax.block_until_ready(layer_normalization(x2, g2, b2, eps=1e-5))
    ref2 = layer_normalization_ref(x2, g2, b2, eps=1e-5)
    assert jnp.allclose(out2, ref2, atol=1e-4, rtol=1e-4), "mismatch vs reference (fallback)"

    # bf16 I/O (f32 statistics) through the lane-dense packed path.
    xb = jax.random.normal(jax.random.PRNGKey(2), (4, 8, 64), dtype=jnp.bfloat16)
    gb = jnp.ones((64,), dtype=jnp.bfloat16)
    bb = jnp.zeros((64,), dtype=jnp.bfloat16)
    outb = jax.block_until_ready(layer_normalization(xb, gb, bb, eps=1e-5))
    refb = layer_normalization_ref(xb.astype(jnp.float32), gb.astype(jnp.float32),
                                   bb.astype(jnp.float32), eps=1e-5)
    assert jnp.allclose(outb.astype(jnp.float32), refb, atol=2e-2, rtol=2e-2), "mismatch (bf16)"

    print("KERNEL_OK")
</pallas_src>

<mosaic_0001>
module attributes {stable_mosaic.version = 11 : i64} {
  func.func @_layernorm_packed_kernel(%arg0: i32, %arg1: memref<4x128xf32, #tpu.memory_space<vmem>>, %arg2: memref<1x128xf32, #tpu.memory_space<vmem>>, %arg3: memref<1x128xf32, #tpu.memory_space<vmem>>, %arg4: memref<128x128xf32, #tpu.memory_space<vmem>>, %arg5: memref<4x128xf32, #tpu.memory_space<vmem>>) attributes {dimension_semantics = [#tpu.dimension_semantics<parallel>], iteration_bounds = array<i64: 1>, scalar_prefetch = 0 : i64, scratch_operands = 0 : i64, tpu.core_type = #tpu.core_type<tc>, window_params = [{transform_indices = @transform_0, window_bounds = array<i64: 4, 128>}, {pipeline_mode = #tpu.pipeline_mode<synchronous>, transform_indices = @transform_1, window_bounds = array<i64: 1, 128>}, {pipeline_mode = #tpu.pipeline_mode<synchronous>, transform_indices = @transform_2, window_bounds = array<i64: 1, 128>}, {pipeline_mode = #tpu.pipeline_mode<synchronous>, transform_indices = @transform_3, window_bounds = array<i64: 128, 128>}, {transform_indices = @transform_4, window_bounds = array<i64: 4, 128>}]} {
    %c0 = arith.constant 0 : index
    %c0_0 = arith.constant 0 : index
    %0 = vector.load %arg1[%c0, %c0_0] : memref<4x128xf32, #tpu.memory_space<vmem>>, vector<4x128xf32>
    %c0_1 = arith.constant 0 : index
    %c0_2 = arith.constant 0 : index
    %1 = vector.load %arg2[%c0_1, %c0_2] : memref<1x128xf32, #tpu.memory_space<vmem>>, vector<1x128xf32>
    %c0_3 = arith.constant 0 : index
    %c0_4 = arith.constant 0 : index
    %2 = vector.load %arg3[%c0_3, %c0_4] : memref<1x128xf32, #tpu.memory_space<vmem>>, vector<1x128xf32>
    %c0_5 = arith.constant 0 : index
    %c0_6 = arith.constant 0 : index
    %3 = vector.load %arg4[%c0_5, %c0_6] : memref<128x128xf32, #tpu.memory_space<vmem>>, vector<128x128xf32>
    %cst = arith.constant dense<0.000000e+00> : vector<4x128xf32>
    %4 = tpu.matmul %0, %3, %cst {dimension_numbers = #tpu.dot_dimension_numbers<[1], [0], [0], [1], [0, 0, 1, 1], [], []>} : vector<4x128xf32>, vector<128x128xf32>, vector<4x128xf32> -> vector<4x128xf32>
    %cst_7 = arith.constant 3.125000e-02 : f32
    %5 = vector.broadcast %cst_7 : f32 to vector<4x128xf32>
    %6 = arith.mulf %4, %5 : vector<4x128xf32>
    %7 = arith.mulf %0, %0 : vector<4x128xf32>
    %cst_8 = arith.constant dense<0.000000e+00> : vector<4x128xf32>
    %8 = tpu.matmul %7, %3, %cst_8 {dimension_numbers = #tpu.dot_dimension_numbers<[1], [0], [0], [1], [0, 0, 1, 1], [], []>} : vector<4x128xf32>, vector<128x128xf32>, vector<4x128xf32> -> vector<4x128xf32>
    %cst_9 = arith.constant 3.125000e-02 : f32
    %9 = vector.broadcast %cst_9 : f32 to vector<4x128xf32>
    %10 = arith.mulf %8, %9 : vector<4x128xf32>
    %11 = arith.mulf %6, %6 : vector<4x128xf32>
    %12 = arith.subf %10, %11 : vector<4x128xf32>
    %cst_10 = arith.constant 0.000000e+00 : f32
    %13 = vector.broadcast %cst_10 : f32 to vector<4x128xf32>
    %14 = arith.maximumf %12, %13 : vector<4x128xf32>
    %cst_11 = arith.constant 9.99999974E-6 : f32
    %15 = vector.broadcast %cst_11 : f32 to vector<4x128xf32>
    %16 = arith.addf %14, %15 : vector<4x128xf32>
    %17 = math.rsqrt %16 : vector<4x128xf32>
    %18 = vector.broadcast %1 : vector<1x128xf32> to vector<4x128xf32>
    %19 = arith.mulf %17, %18 : vector<4x128xf32>
    %20 = arith.mulf %6, %19 : vector<4x128xf32>
    %21 = vector.broadcast %2 : vector<1x128xf32> to vector<4x128xf32>
    %22 = arith.subf %21, %20 : vector<4x128xf32>
    %23 = arith.mulf %0, %19 : vector<4x128xf32>
    %24 = arith.addf %23, %22 : vector<4x128xf32>
    %c0_12 = arith.constant 0 : index
    %c0_13 = arith.constant 0 : index
    %25 = vector.load %arg5[%c0_12, %c0_13] : memref<4x128xf32, #tpu.memory_space<vmem>>, vector<4x128xf32>
    tpu.vector_store %arg5[%c0_12, %c0_13], %24 {strides = array<i32>} : memref<4x128xf32, #tpu.memory_space<vmem>>, vector<4x128xf32>,
    return
  }
  func.func @transform_0(%arg0: i32) -> (i32, i32) {
    %c0_i32 = arith.constant 0 : i32
    %c0_i32_0 = arith.constant 0 : i32
    return %arg0, %c0_i32 : i32, i32
  }
  func.func @transform_1(%arg0: i32) -> (i32, i32) {
    %c0_i32 = arith.constant 0 : i32
    %c0_i32_0 = arith.constant 0 : i32
    %c0_i32_1 = arith.constant 0 : i32
    return %c0_i32, %c0_i32_0 : i32, i32
  }
  func.func @transform_2(%arg0: i32) -> (i32, i32) {
    %c0_i32 = arith.constant 0 : i32
    %c0_i32_0 = arith.constant 0 : i32
    %c0_i32_1 = arith.constant 0 : i32
    return %c0_i32, %c0_i32_0 : i32, i32
  }
  func.func @transform_3(%arg0: i32) -> (i32, i32) {
    %c0_i32 = arith.constant 0 : i32
    %c0_i32_0 = arith.constant 0 : i32
    %c0_i32_1 = arith.constant 0 : i32
    return %c0_i32, %c0_i32_0 : i32, i32
  }
  func.func @transform_4(%arg0: i32) -> (i32, i32) {
    %c0_i32 = arith.constant 0 : i32
    %c0_i32_0 = arith.constant 0 : i32
    return %arg0, %c0_i32 : i32, i32
  }
}

</mosaic_0001>

<llo_original>
// kernel: tpu_custom_call.1
$region0: #{tpu_custom_call.1}
  #allocation0 [shape = 'u32[]', space=smem, size = 0x4, offset = 0x4, fixed_abs, tag = 'smem constant byte address 0x4 - core index']
  #allocation1 [shape = 'u32[144,128]{1,0:T(1,128)}', space=vmem, size = 0x12000, scoped, tag = 'internal scratch']
  %s0 = inlined_call_operand.hbm [shape: f32[4,128], index: 0, kind: input, shape index: {}]
  %s1 = inlined_call_operand.vmem [shape: f32[1,128], index: 1, kind: input, shape index: {}]
  %s2 = inlined_call_operand.vmem [shape: f32[1,128], index: 2, kind: input, shape index: {}]
  %s3 = inlined_call_operand.hbm [shape: f32[128,128], index: 3, kind: input, shape index: {}]
  %s4 = inlined_call_operand.hbm [shape: f32[4,128], index: 4, kind: output, shape index: {}]
  %s5 = sld [smem:[#allocation0]]
  $region34: #{tpu_custom_call.1} parent=0
    _
  %s7 = ssub.s32 1, %s5
  %s8 = scalar_select 0, %s7, %s5
  $region1: #{tpu_custom_call.1} parent=0
    #allocation2 [shape = 'u8[2048]{0}', space=vmem, size = 0x800, scoped, tag = 'input window, operand 0, single buffered']
    #allocation3 [shape = 's32[1]{0}', space=sflag, size = 0x4, scoped, tag = 'scoped memory for tpu_custom_call.1']
    #allocation4 [shape = 's32[1]{0}', space=sflag, size = 0x4, scoped, tag = 'scoped memory for tpu_custom_call.1']
    #allocation5 [shape = 'u8[65536]{0}', space=vmem, size = 0x10000, scoped, tag = 'input window, operand 3, single buffered']
    #allocation6 [shape = 's32[1]{0}', space=sflag, size = 0x4, scoped, tag = 'scoped memory for tpu_custom_call.1']
    #allocation7 [shape = 'u8[2048]{0}', space=vmem, size = 0x800, scoped, tag = 'output window, operand 0, single buffered']
    %9 = vsyncpa [#allocation3], 0
    %10 = vsyncpa [#allocation6], 0
    %11 = vsyncpa [#allocation4], 0
    // Predicated region
    $region2: #{tpu_custom_call.1} parent=1 // pred_check
      _
    $region3: #{tpu_custom_call.1} parent=1 // pred_check_branch
      %13 = sbr.rel (0) target = $region5
    $region4: #{tpu_custom_call.1} parent=1 // pred_region
      %s15 = ssub.s32 64, 64
      %16 = vsyncadd [#allocation3], %s15
      %s18 = sshll.u32 [#allocation2], 4
      %s19 = int_to_ptr.vmem [resolvable:$true] %s18
      %21 = dma.hbm_to_vmem [thread:$0]  %s0, 64, %s19, [#allocation3]
    $region5: #{tpu_custom_call.1} parent=1 // pred_fallthru
      _
    // Predicated region
    $region6: #{tpu_custom_call.1} parent=1 // pred_check
      _
    $region7: #{tpu_custom_call.1} parent=1 // pred_check_branch
      %23 = sbr.rel (0) target = $region9
    $region8: #{tpu_custom_call.1} parent=1 // pred_region
      _
    $region9: #{tpu_custom_call.1} parent=1 // pred_fallthru
      _
    // Predicated region
    $region10: #{tpu_custom_call.1} parent=1 // pred_check
      _
    $region11: #{tpu_custom_call.1} parent=1 // pred_check_branch
      %25 = sbr.rel (0) target = $region13
    $region12: #{tpu_custom_call.1} parent=1 // pred_region
      _
    $region13: #{tpu_custom_call.1} parent=1 // pred_fallthru
      _
    // Predicated region
    $region14: #{tpu_custom_call.1} parent=1 // pred_check
      _
    $region15: #{tpu_custom_call.1} parent=1 // pred_check_branch
      %27 = sbr.rel (0) target = $region17
    $region16: #{tpu_custom_call.1} parent=1 // pred_region
      %s29 = ssub.s32 2048, 2048
      %30 = vsyncadd [#allocation6], %s29
      %s31 = sshll.u32 [#allocation5], 4
      %s32 = int_to_ptr.vmem [resolvable:$true] %s31
      %37 = dma.hbm_to_vmem [thread:$0]  %s3, 2048, %s32, [#allocation6], 128, 128, 8
    $region17: #{tpu_custom_call.1} parent=1 // pred_fallthru
      _
    // Predicated region
    $region18: #{tpu_custom_call.1} parent=1 // pred_check
      _
    $region19: #{tpu_custom_call.1} parent=1 // pred_check_branch
      %39 = sbr.rel (0) target = $region21
    $region20: #{tpu_custom_call.1} parent=1 // pred_region
      %40 = dma.done [#allocation3], 64
    $region21: #{tpu_custom_call.1} parent=1 // pred_fallthru
      _
    // Predicated region
    $region22: #{tpu_custom_call.1} parent=1 // pred_check
      _
    $region23: #{tpu_custom_call.1} parent=1 // pred_check_branch
      %42 = sbr.rel (0) target = $region25
    $region24: #{tpu_custom_call.1} parent=1 // pred_region
      %43 = dma.done [#allocation6], 2048
    $region25: #{tpu_custom_call.1} parent=1 // pred_fallthru
      _
    %v44 = vld [vmem:[#allocation2] sm:$0xf]
    %v45 = vld [vmem:[%s1] sm:$0x1]
    %v46 = vld [vmem:[%s2] sm:$0x1]
    %v47 = vld [vmem:[#allocation5] sm:$0xff]
    %v48 = vld [vmem:[#allocation5 + $0x8] sm:$0xff]
    %v49 = vld [vmem:[#allocation5 + $0x10] sm:$0xff]
    %v50 = vld [vmem:[#allocation5 + $0x18] sm:$0xff]
    %v51 = vld [vmem:[#allocation5 + $0x20] sm:$0xff]
    %v52 = vld [vmem:[#allocation5 + $0x28] sm:$0xff]
    %v53 = vld [vmem:[#allocation5 + $0x30] sm:$0xff]
    %v54 = vld [vmem:[#allocation5 + $0x38] sm:$0xff]
    %v55 = vld [vmem:[#allocation5 + $0x40] sm:$0xff]
    %v56 = vld [vmem:[#allocation5 + $0x48] sm:$0xff]
    %v57 = vld [vmem:[#allocation5 + $0x50] sm:$0xff]
    %v58 = vld [vmem:[#allocation5 + $0x58] sm:$0xff]
    %v59 = vld [vmem:[#allocation5 + $0x60] sm:$0xff]
    %v60 = vld [vmem:[#allocation5 + $0x68] sm:$0xff]
    %v61 = vld [vmem:[#allocation5 + $0x70] sm:$0xff]
    %v62 = vld [vmem:[#allocation5 + $0x78] sm:$0xff]
    %63 = vmatprep.subr.mxu0 0.0
    %64 = vmatpush1.msra.mxu0 %v47
    %65 = vmatprep.subr.mxu0 0.0
    %66 = vmatpush1.msra.mxu0 %v48
    %67 = vmatprep.subr.mxu0 0.0
    %68 = vmatpush1.msra.mxu0 %v49
    %69 = vmatprep.subr.mxu0 0.0
    %70 = vmatpush1.msra.mxu0 %v50
    %71 = vmatprep.subr.mxu0 0.0
    %72 = vmatpush1.msra.mxu0 %v51
    %73 = vmatprep.subr.mxu0 0.0
    %74 = vmatpush1.msra.mxu0 %v52
    %75 = vmatprep.subr.mxu0 0.0
    %76 = vmatpush1.msra.mxu0 %v53
    %77 = vmatprep.subr.mxu0 0.0
    %78 = vmatpush1.msra.mxu0 %v54
    %79 = vmatprep.subr.mxu0 0.0
    %80 = vmatpush1.msra.mxu0 %v55
    %81 = vmatprep.subr.mxu0 0.0
    %82 = vmatpush1.msra.mxu0 %v56
    %83 = vmatprep.subr.mxu0 0.0
    %84 = vmatpush1.msra.mxu0 %v57
    %85 = vmatprep.subr.mxu0 0.0
    %86 = vmatpush1.msra.mxu0 %v58
    %87 = vmatprep.subr.mxu0 0.0
    %88 = vmatpush1.msra.mxu0 %v59
    %89 = vmatprep.subr.mxu0 0.0
    %90 = vmatpush1.msra.mxu0 %v60
    %91 = vmatprep.subr.mxu0 0.0
    %92 = vmatpush1.msra.mxu0 %v61
    %93 = vmatprep.subr.mxu0 0.0
    %94 = vmatpush1.msra.mxu0 %v62
    %95 = vmatprep.subr.mxu0 0.0
    %96 = vmatpush1.msra.mxu0 0.0
    %97 = vmatprep.subr.mxu0 0.0
    %98 = vmatpush1.msra.mxu0 0.0
    %99 = vmatprep.subr.mxu0 0.0
    %100 = vmatpush1.msra.mxu0 0.0
    %101 = vmatprep.subr.mxu0 0.0
    %102 = vmatpush1.msra.mxu0 0.0
    %103 = vmatprep.subr.mxu0 0.0
    %104 = vmatpush1.msra.mxu0 0.0
    %105 = vmatprep.subr.mxu0 0.0
    %106 = vmatpush1.msra.mxu0 0.0
    %107 = vmatprep.subr.mxu0 0.0
    %108 = vmatpush1.msra.mxu0 0.0
    %109 = vmatprep.subr.mxu0 0.0
    %110 = vmatpush1.msra.mxu0 0.0
    %111 = vmatprep.subr.mxu0 0.0
    %112 = vmatpush1.msra.mxu0 0.0
    %113 = vmatprep.subr.mxu0 0.0
    %114 = vmatpush1.msra.mxu0 0.0
    %115 = vmatprep.subr.mxu0 0.0
    %116 = vmatpush1.msra.mxu0 0.0
    %117 = vmatprep.subr.mxu0 0.0
    %118 = vmatpush1.msra.mxu0 0.0
    %119 = vmatprep.subr.mxu0 0.0
    %120 = vmatpush1.msra.mxu0 0.0
    %121 = vmatprep.subr.mxu0 0.0
    %122 = vmatpush1.msra.mxu0 0.0
    %123 = vmatprep.subr.mxu0 0.0
    %124 = vmatpush1.msra.mxu0 0.0
    %125 = vmatprep.subr.mxu0 0.0
    %126 = vmatpush1.msra.mxu0 0.0
    %127 = vmatprep.mubr.f32.mxu0 0.0
    %128 = vmatmul.mubr.f32.gmra.mrb[0].mxu0 %v44
    %v129 = vpop.f32.mrb[0].mxu0
    %v130 = vadd.f32 0.0, %v129
    %v131 = vpop.f32.mrb[0].mxu0
    %132 = vdwg.mxu0
    %v133 = vmul.f32 %v130, 0.03125
    %v134 = vmul.f32 %v44, %v44
    %135 = vmatprep.subr.mxu0 0.0
    %136 = vmatpush1.msra.mxu0 %v47
    %137 = vmatprep.subr.mxu0 0.0
    %138 = vmatpush1.msra.mxu0 %v48
    %139 = vmatprep.subr.mxu0 0.0
    %140 = vmatpush1.msra.mxu0 %v49
    %141 = vmatprep.subr.mxu0 0.0
    %142 = vmatpush1.msra.mxu0 %v50
    %143 = vmatprep.subr.mxu0 0.0
    %144 = vmatpush1.msra.mxu0 %v51
    %145 = vmatprep.subr.mxu0 0.0
    %146 = vmatpush1.msra.mxu0 %v52
    %147 = vmatprep.subr.mxu0 0.0
    %148 = vmatpush1.msra.mxu0 %v53
    %149 = vmatprep.subr.mxu0 0.0
    %150 = vmatpush1.msra.mxu0 %v54
    %151 = vmatprep.subr.mxu0 0.0
    %152 = vmatpush1.msra.mxu0 %v55
    %153 = vmatprep.subr.mxu0 0.0
    %154 = vmatpush1.msra.mxu0 %v56
    %155 = vmatprep.subr.mxu0 0.0
    %156 = vmatpush1.msra.mxu0 %v57
    %157 = vmatprep.subr.mxu0 0.0
    %158 = vmatpush1.msra.mxu0 %v58
    %159 = vmatprep.subr.mxu0 0.0
    %160 = vmatpush1.msra.mxu0 %v59
    %161 = vmatprep.subr.mxu0 0.0
    %162 = vmatpush1.msra.mxu0 %v60
    %163 = vmatprep.subr.mxu0 0.0
    %164 = vmatpush1.msra.mxu0 %v61
    %165 = vmatprep.subr.mxu0 0.0
    %166 = vmatpush1.msra.mxu0 %v62
    %167 = vmatprep.subr.mxu0 0.0
    %168 = vmatpush1.msra.mxu0 0.0
    %169 = vmatprep.subr.mxu0 0.0
    %170 = vmatpush1.msra.mxu0 0.0
    %171 = vmatprep.subr.mxu0 0.0
    %172 = vmatpush1.msra.mxu0 0.0
    %173 = vmatprep.subr.mxu0 0.0
    %174 = vmatpush1.msra.mxu0 0.0
    %175 = vmatprep.subr.mxu0 0.0
    %176 = vmatpush1.msra.mxu0 0.0
    %177 = vmatprep.subr.mxu0 0.0
    %178 = vmatpush1.msra.mxu0 0.0
    %179 = vmatprep.subr.mxu0 0.0
    %180 = vmatpush1.msra.mxu0 0.0
    %181 = vmatprep.subr.mxu0 0.0
    %182 = vmatpush1.msra.mxu0 0.0
    %183 = vmatprep.subr.mxu0 0.0
    %184 = vmatpush1.msra.mxu0 0.0
    %185 = vmatprep.subr.mxu0 0.0
    %186 = vmatpush1.msra.mxu0 0.0
    %187 = vmatprep.subr.mxu0 0.0
    %188 = vmatpush1.msra.mxu0 0.0
    %189 = vmatprep.subr.mxu0 0.0
    %190 = vmatpush1.msra.mxu0 0.0
    %191 = vmatprep.subr.mxu0 0.0
    %192 = vmatpush1.msra.mxu0 0.0
    %193 = vmatprep.subr.mxu0 0.0
    %194 = vmatpush1.msra.mxu0 0.0
    %195 = vmatprep.subr.mxu0 0.0
    %196 = vmatpush1.msra.mxu0 0.0
    %197 = vmatprep.subr.mxu0 0.0
    %198 = vmatpush1.msra.mxu0 0.0
    %199 = vmatprep.mubr.f32.mxu0 0.0
    %200 = vmatmul.mubr.f32.gmra.mrb[0].mxu0 %v134
    %v201 = vpop.f32.mrb[0].mxu0
    %v202 = vadd.f32 0.0, %v201
    %v203 = vpop.f32.mrb[0].mxu0
    %204 = vdwg.mxu0
    %v205 = vmul.f32 %v202, 0.03125
    %v206 = vmul.f32 %v133, %v133
    %v207 = vsub.f32 %v205, %v206
    %v208 = vmax.f32 %v207, 0.0
    %v209 = vadd.f32 %v208, 1e-05
    %v210 = vrsqrt.pop %v209
    %v212 = vlaneseq
    %v213 = vshrl.u32 %v212, 7
    %v214 = vsub.s32 0, %v213
    %v215 = vrot.slane %v45, %v214
    %v217 = vmul.f32 %v210, %v215
    %v218 = vmul.f32 %v133, %v217
    %v220 = vlaneseq
    %v221 = vshrl.u32 %v220, 7
    %v222 = vsub.s32 0, %v221
    %v223 = vrot.slane %v46, %v222
    %v225 = vsub.f32 %v223, %v218
    %v226 = vmul.f32 %v44, %v217
    %v227 = vadd.f32 %v226, %v225
    %228 = vst [vmem:[#allocation7] sm:$0xf] %v227
    // Predicated region
    $region26: #{tpu_custom_call.1} parent=1 // pred_check
      _
    $region27: #{tpu_custom_call.1} parent=1 // pred_check_branch
      %230 = sbr.rel (0) target = $region29
    $region28: #{tpu_custom_call.1} parent=1 // pred_region
      %s232 = ssub.s32 64, 64
      %233 = vsyncadd [#allocation4], %s232
      %s235 = sshll.u32 [#allocation7], 4
      %s236 = int_to_ptr.vmem [resolvable:$true] %s235
      %238 = dma.vmem_to_hbm [thread:$0]  %s236, 64, %s4, [#allocation4]
    $region29: #{tpu_custom_call.1} parent=1 // pred_fallthru
      _
    // Predicated region
    $region30: #{tpu_custom_call.1} parent=1 // pred_check
      _
    $region31: #{tpu_custom_call.1} parent=1 // pred_check_branch
      %240 = sbr.rel (0) target = $region33
    $region32: #{tpu_custom_call.1} parent=1 // pred_region
      %241 = dma.done [#allocation4], 64
    $region33: #{tpu_custom_call.1} parent=1 // pred_fallthru
      _
    %242 = vsyncpa [#allocation3], 1
    %243 = vsyncpa [#allocation6], 1
    %244 = vsyncpa [#allocation4], 1

</llo_original>
